<compile_context>
chip_gen: v7x
topology: tpu7x:2x2x1
jax: 0.10.0
libtpu: 0.0.40
codegen_flags: <defaults>
</compile_context>

<pallas_src>
import math
import functools

import jax
import jax.numpy as jnp
from jax import lax
from jax.experimental import pallas as pl
from jax.experimental.pallas import tpu as pltpu

# ---------------- hyper-parameters (match the PyTorch module's __init__) ----
EMB_SIZE = 128       # emb_size
NUM_CLASSES = 256    # num_classes
MARGIN_M = 0.5       # args.margin_m
MARGIN_S = 64.0      # args.margin_s
EASY_MARGIN = False  # args.easy_margin

COS_M = math.cos(MARGIN_M)
SIN_M = math.sin(MARGIN_M)
TH = math.cos(math.pi - MARGIN_M)
MM = math.sin(math.pi - MARGIN_M) * MARGIN_M

EPS = 1e-12  # F.normalize default eps


def _arc_margin_kernel(label_ref, xn_ref, w_ref, o_ref, *, tn, easy_margin):
    j = pl.program_id(0)

    x_n = xn_ref[...]                          # (B, E) f32, already normalized
    # Upcast the streamed bf16 tile once; reused by the MXU feed and the
    # sum-of-squares.  HBM-bound kernel -> the f32 MXU path is free.
    w = w_ref[...].astype(jnp.float32)         # (E, TN)

    # Raw (un-normalized-W) similarity: canonical (B,E) @ (E,TN) -> (B,TN).
    # Contraction on lhs lanes / rhs sublanes: transpose-free into the MXU,
    # lane-dense output.
    raw = lax.dot_general(
        x_n, w,
        dimension_numbers=(((1,), (0,)), ((), ())),
        preferred_element_type=jnp.float32)

    # Per-class inverse norm as a (1, TN) lane row.  rsqrt runs on the (idle)
    # EUP; scaling the (B, TN) result replaces E*TN VPU normalize-muls with
    # B*TN and avoids materializing a second (E, TN) tile.
    sumsq = jnp.sum(w * w, axis=0, keepdims=True)           # (1, TN)
    inv_norm = lax.rsqrt(jnp.maximum(sumsq, EPS * EPS))     # == 1/max(||w||,eps)
    cosine = raw * inv_norm                                 # (B, TN)

    # ArcFace margin math (matches torch exactly; intentionally no clamp of
    # 1 - cos^2, so |cos| rounding above 1.0 yields NaN just like the spec).
    sine = jnp.sqrt(1.0 - cosine * cosine)
    phi = cosine * COS_M - sine * SIN_M
    if easy_margin:
        phi = jnp.where(cosine > 0.0, phi, cosine)
    else:
        phi = jnp.where(cosine > TH, phi, cosine - MM)

    # one_hot*phi + (1-one_hot)*cosine  ==  where(col == label, phi, cosine)
    b = cosine.shape[0]
    cols = j * tn + lax.broadcasted_iota(jnp.int32, (b, tn), 1)   # (B, TN)
    out = jnp.where(cols == label_ref[...], phi, cosine)

    o_ref[...] = (out * MARGIN_S).astype(o_ref.dtype)


def _pick_tn(C, E, B, w_bytes):
    """Largest 128-multiple class tile that divides C and fits the VMEM budget
    (double-buffered W + out tiles, dtype-aware).  Keep >= 2 grid steps (v7x
    megacore split / pipelining) only when each step still covers >= 512
    classes -- per-step overhead (~0.35us) otherwise outweighs the benefit --
    and prefer an even step count so both v7x cores get equal work."""
    budget = 20 * 1024 * 1024

    def fits(t):
        return 2 * (t * E * w_bytes + B * t * 4) <= budget

    cands = [t for t in (4096, 2048, 1024, 512, 256, 128)
             if C % t == 0 and fits(t)]
    if not cands:
        return C   # single full-C tile (block dims equal the full array dims)
    multi = [t for t in cands if t >= 512 and C // t >= 2]
    even = [t for t in multi if (C // t) % 2 == 0]
    if even:
        return even[0]
    if multi:
        return multi[0]
    return cands[0]


def _vmem_limit_bytes(B, E, tn, w_bytes):
    """Explicit, dtype-aware scoped-VMEM request: resident x_n + label block
    plus double-buffered streamed W/out tiles, with headroom; clamped to a
    range valid on v5e/v6e/v7x (<= 32 MiB, never below the v5e default)."""
    resident = B * E * 4 + 8 * 128 * 4                  # x_n + (padded) label
    streamed = 2 * (tn * E * w_bytes) + 2 * (B * tn * 4)
    need = resident + streamed
    return int(min(32 * 1024 * 1024, max(16 * 1024 * 1024, 2 * need)))


def prepare_weight(weight_ce, dtype=jnp.bfloat16):
    """Convert the PyTorch-layout (C, E) f32 parameter into the kernel-layout
    (E, C) streaming parameter.  Transposed so streamed (E, tn) tiles hit the
    MXU transpose-free and sum(w*w, axis=0) lands as a lane-dense (1, tn) row;
    bf16 halves the HBM bytes of the dominant W read.  In production this is
    how the parameter would be stored (done once, not per forward)."""
    return jnp.asarray(weight_ce, jnp.float32).T.astype(dtype)


def arc_margin_forward(x, weight_t, label, *, tn=None, easy_margin=EASY_MARGIN):
    """x: (B, E) f32, weight_t: (E, C) bf16/f32 (see prepare_weight),
    label: (B,) int -> (B, C) f32 logits."""
    B, E = x.shape
    E2, C = weight_t.shape
    assert E == E2
    w_bytes = jnp.dtype(weight_t.dtype).itemsize
    if tn is None:
        tn = _pick_tn(C, E, B, w_bytes)
    assert C % tn == 0

    # Hoist x L2-normalization out of the per-class-tile loop: constant across
    # the C grid, so do the tiny (B, E) op once here (rsqrt form of
    # x / max(||x||, eps)).
    x = x.astype(jnp.float32)
    x_n = x * lax.rsqrt(
        jnp.maximum(jnp.sum(x * x, axis=-1, keepdims=True), EPS * EPS))
    label2d = label.astype(jnp.int32).reshape(B, 1)

    kernel = functools.partial(_arc_margin_kernel, tn=tn,
                               easy_margin=easy_margin)

    # TODO(synk): at very large B, move `label` to scalar prefetch (SMEM) to
    # drop the one masked (B,1) VMEM load; negligible at small B.
    return pl.pallas_call(
        kernel,
        out_shape=jax.ShapeDtypeStruct((B, C), jnp.float32),
        grid_spec=pltpu.PrefetchScalarGridSpec(
            num_scalar_prefetch=0,
            grid=(C // tn,),
            in_specs=[
                pl.BlockSpec((B, 1), lambda j: (0, 0)),    # label  (resident)
                pl.BlockSpec((B, E), lambda j: (0, 0)),    # x_n    (resident)
                pl.BlockSpec((E, tn), lambda j: (0, j)),   # W tile (streamed)
            ],
            out_specs=pl.BlockSpec((B, tn), lambda j: (0, j)),
        ),
        compiler_params=pltpu.CompilerParams(
            dimension_semantics=("parallel",),
            vmem_limit_bytes=_vmem_limit_bytes(B, E, tn, w_bytes)),
    )(label2d, x_n, weight_t)


def _reference(x, weight_ce, label, easy_margin=EASY_MARGIN):
    """Pure-JAX port of the PyTorch forward, on (C, E) f32 weights."""
    x_n = x / jnp.maximum(jnp.linalg.norm(x, axis=-1, keepdims=True), EPS)
    w_n = weight_ce / jnp.maximum(
        jnp.linalg.norm(weight_ce, axis=-1, keepdims=True), EPS)
    cosine = jnp.dot(x_n, w_n.T, precision=lax.Precision.HIGHEST)
    sine = jnp.sqrt(1.0 - cosine ** 2)
    phi = cosine * COS_M - sine * SIN_M
    if easy_margin:
        phi = jnp.where(cosine > 0.0, phi, cosine)
    else:
        phi = jnp.where(cosine > TH, phi, cosine - MM)
    one_hot = jax.nn.one_hot(label, cosine.shape[1], dtype=cosine.dtype)
    return (one_hot * phi + (1.0 - one_hot) * cosine) * MARGIN_S


if __name__ == "__main__":
    key = jax.random.PRNGKey(0)
    k_x, k_w, k_l = jax.random.split(key, 3)

    B = 8
    x = jax.random.normal(k_x, (B, EMB_SIZE), dtype=jnp.float32)
    label = jax.random.randint(k_l, (B,), 0, NUM_CLASSES, dtype=jnp.int32)

    # xavier_uniform_ init for the (num_classes, emb_size) parameter.
    limit = math.sqrt(6.0 / (NUM_CLASSES + EMB_SIZE))
    weight = jax.random.uniform(
        k_w, (NUM_CLASSES, EMB_SIZE), dtype=jnp.float32,
        minval=-limit, maxval=limit)

    # Parameter as stored for this kernel: (E, C), bf16 streaming dtype.
    weight_t = prepare_weight(weight, dtype=jnp.bfloat16)

    out = jax.block_until_ready(arc_margin_forward(x, weight_t, label))

    # Reference runs on the dequantized stored weights so it validates the
    # kernel math (norms / margin / one-hot / scale) rather than the bf16
    # storage rounding of the parameter itself.
    w_deq = weight_t.astype(jnp.float32).T                  # (C, E)
    ref = _reference(x, w_deq, label)

    assert out.shape == (B, NUM_CLASSES)
    assert bool(jnp.all(jnp.isfinite(out))), "non-finite output"
    assert jnp.allclose(out, ref, atol=5e-3, rtol=5e-3), (
        "mismatch vs reference: max abs diff = "
        f"{float(jnp.max(jnp.abs(out - ref)))}")

    print("KERNEL_OK")
</pallas_src>

<mosaic_0001>
module attributes {stable_mosaic.version = 11 : i64} {
  func.func @_arc_margin_kernel(%arg0: i32, %arg1: memref<8x1xi32, #tpu.memory_space<vmem>>, %arg2: memref<8x128xf32, #tpu.memory_space<vmem>>, %arg3: memref<128x256xbf16, #tpu.memory_space<vmem>>, %arg4: memref<8x256xf32, #tpu.memory_space<vmem>>) attributes {dimension_semantics = [#tpu.dimension_semantics<parallel>], iteration_bounds = array<i64: 1>, scalar_prefetch = 0 : i64, scratch_operands = 0 : i64, tpu.core_type = #tpu.core_type<tc>, window_params = [{pipeline_mode = #tpu.pipeline_mode<synchronous>, transform_indices = @transform_0, window_bounds = array<i64: 8, 1>}, {pipeline_mode = #tpu.pipeline_mode<synchronous>, transform_indices = @transform_1, window_bounds = array<i64: 8, 128>}, {transform_indices = @transform_2, window_bounds = array<i64: 128, 256>}, {transform_indices = @transform_3, window_bounds = array<i64: 8, 256>}]} {
    %c0 = arith.constant 0 : index
    %c0_0 = arith.constant 0 : index
    %0 = vector.load %arg2[%c0, %c0_0] : memref<8x128xf32, #tpu.memory_space<vmem>>, vector<8x128xf32>
    %c0_1 = arith.constant 0 : index
    %c0_2 = arith.constant 0 : index
    %1 = vector.load %arg3[%c0_1, %c0_2] : memref<128x256xbf16, #tpu.memory_space<vmem>>, vector<128x256xbf16>
    %2 = arith.extf %1 : vector<128x256xbf16> to vector<128x256xf32>
    %cst = arith.constant dense<0.000000e+00> : vector<8x256xf32>
    %3 = tpu.matmul %0, %2, %cst {dimension_numbers = #tpu.dot_dimension_numbers<[1], [0], [0], [1], [0, 0, 1, 1], [], []>} : vector<8x128xf32>, vector<128x256xf32>, vector<8x256xf32> -> vector<8x256xf32>
    %4 = arith.mulf %2, %2 : vector<128x256xf32>
    %cst_3 = arith.constant dense<0.000000e+00> : vector<256xf32>
    %5 = vector.multi_reduction <add>, %4, %cst_3 [0] : vector<128x256xf32> to vector<256xf32>
    %6 = vector.shape_cast %5 : vector<256xf32> to vector<1x256xf32>
    %cst_4 = arith.constant 1.000000e-24 : f32
    %7 = vector.broadcast %cst_4 : f32 to vector<1x256xf32>
    %8 = arith.maximumf %6, %7 : vector<1x256xf32>
    %9 = math.rsqrt %8 : vector<1x256xf32>
    %10 = vector.broadcast %9 : vector<1x256xf32> to vector<8x256xf32>
    %11 = arith.mulf %3, %10 : vector<8x256xf32>
    %12 = arith.mulf %11, %11 : vector<8x256xf32>
    %cst_5 = arith.constant 1.000000e+00 : f32
    %13 = vector.broadcast %cst_5 : f32 to vector<8x256xf32>
    %14 = arith.subf %13, %12 : vector<8x256xf32>
    %15 = math.sqrt %14 : vector<8x256xf32>
    %cst_6 = arith.constant 0.87758255 : f32
    %16 = vector.broadcast %cst_6 : f32 to vector<8x256xf32>
    %17 = arith.mulf %11, %16 : vector<8x256xf32>
    %cst_7 = arith.constant 0.47942555 : f32
    %18 = vector.broadcast %cst_7 : f32 to vector<8x256xf32>
    %19 = arith.mulf %15, %18 : vector<8x256xf32>
    %20 = arith.subf %17, %19 : vector<8x256xf32>
    %cst_8 = arith.constant -0.87758255 : f32
    %21 = vector.broadcast %cst_8 : f32 to vector<8x256xf32>
    %22 = arith.cmpf ogt, %11, %21 : vector<8x256xf32>
    %cst_9 = arith.constant 0.239712775 : f32
    %23 = vector.broadcast %cst_9 : f32 to vector<8x256xf32>
    %24 = arith.subf %11, %23 : vector<8x256xf32>
    %25 = arith.select %22, %20, %24 : vector<8x256xi1>, vector<8x256xf32>
    %c256_i32 = arith.constant 256 : i32
    %26 = arith.muli %arg0, %c256_i32 : i32
    %27 = tpu.iota {dimensions = array<i32: 1>} : vector<8x256xi32>
    %28 = vector.broadcast %26 : i32 to vector<8x256xi32>
    %29 = arith.addi %28, %27 : vector<8x256xi32>
    %c0_10 = arith.constant 0 : index
    %c0_11 = arith.constant 0 : index
    %30 = vector.load %arg1[%c0_10, %c0_11] : memref<8x1xi32, #tpu.memory_space<vmem>>, vector<8x1xi32>
    %31 = vector.broadcast %30 : vector<8x1xi32> to vector<8x256xi32>
    %32 = arith.cmpi eq, %29, %31 : vector<8x256xi32>
    %33 = arith.select %32, %25, %11 : vector<8x256xi1>, vector<8x256xf32>
    %cst_12 = arith.constant 6.400000e+01 : f32
    %34 = vector.broadcast %cst_12 : f32 to vector<8x256xf32>
    %35 = arith.mulf %33, %34 : vector<8x256xf32>
    %c0_13 = arith.constant 0 : index
    %c0_14 = arith.constant 0 : index
    %36 = vector.load %arg4[%c0_13, %c0_14] : memref<8x256xf32, #tpu.memory_space<vmem>>, vector<8x256xf32>
    tpu.vector_store %arg4[%c0_13, %c0_14], %35 {strides = array<i32>} : memref<8x256xf32, #tpu.memory_space<vmem>>, vector<8x256xf32>,
    return
  }
  func.func @transform_0(%arg0: i32) -> (i32, i32) {
    %c0_i32 = arith.constant 0 : i32
    %c0_i32_0 = arith.constant 0 : i32
    %c0_i32_1 = arith.constant 0 : i32
    return %c0_i32, %c0_i32_0 : i32, i32
  }
  func.func @transform_1(%arg0: i32) -> (i32, i32) {
    %c0_i32 = arith.constant 0 : i32
    %c0_i32_0 = arith.constant 0 : i32
    %c0_i32_1 = arith.constant 0 : i32
    return %c0_i32, %c0_i32_0 : i32, i32
  }
  func.func @transform_2(%arg0: i32) -> (i32, i32) {
    %c0_i32 = arith.constant 0 : i32
    %c0_i32_0 = arith.constant 0 : i32
    return %c0_i32, %arg0 : i32, i32
  }
  func.func @transform_3(%arg0: i32) -> (i32, i32) {
    %c0_i32 = arith.constant 0 : i32
    %c0_i32_0 = arith.constant 0 : i32
    return %c0_i32, %arg0 : i32, i32
  }
}

</mosaic_0001>

<llo_original>
// kernel: tpu_custom_call.1
$region0: #{tpu_custom_call.1}
  #allocation0 [shape = 'u32[]', space=smem, size = 0x4, offset = 0x4, fixed_abs, tag = 'smem constant byte address 0x4 - core index']
  #allocation1 [shape = 'u32[144,128]{1,0:T(1,128)}', space=vmem, size = 0x12000, scoped, tag = 'internal scratch']
  %s0 = inlined_call_operand.vmem [shape: s32[8,1], index: 0, kind: input, shape index: {}]
  %s1 = inlined_call_operand.vmem [shape: f32[8,128], index: 1, kind: input, shape index: {}]
  %s2 = inlined_call_operand.hbm [shape: bf16[128,256], index: 2, kind: input, shape index: {}]
  %s3 = inlined_call_operand.hbm [shape: f32[8,256], index: 3, kind: output, shape index: {}]
  %s4 = sld [smem:[#allocation0]]
  $region26: #{tpu_custom_call.1} parent=0
    _
  %s6 = ssub.s32 1, %s4
  %s7 = scalar_select 0, %s6, %s4
  $region1: #{tpu_custom_call.1} parent=0
    #allocation2 [shape = 'u8[65536]{0}', space=vmem, size = 0x10000, scoped, tag = 'input window, operand 2, single buffered']
    #allocation3 [shape = 's32[1]{0}', space=sflag, size = 0x4, scoped, tag = 'scoped memory for tpu_custom_call.1']
    #allocation4 [shape = 's32[1]{0}', space=sflag, size = 0x4, scoped, tag = 'scoped memory for tpu_custom_call.1']
    #allocation5 [shape = 'u8[8192]{0}', space=vmem, size = 0x2000, scoped, tag = 'output window, operand 0, single buffered']
    %8 = vsyncpa [#allocation3], 0
    %9 = vsyncpa [#allocation4], 0
    // Predicated region
    $region2: #{tpu_custom_call.1} parent=1 // pred_check
      _
    $region3: #{tpu_custom_call.1} parent=1 // pred_check_branch
      %11 = sbr.rel (0) target = $region5
    $region4: #{tpu_custom_call.1} parent=1 // pred_region
      _
    $region5: #{tpu_custom_call.1} parent=1 // pred_fallthru
      _
    // Predicated region
    $region6: #{tpu_custom_call.1} parent=1 // pred_check
      _
    $region7: #{tpu_custom_call.1} parent=1 // pred_check_branch
      %13 = sbr.rel (0) target = $region9
    $region8: #{tpu_custom_call.1} parent=1 // pred_region
      _
    $region9: #{tpu_custom_call.1} parent=1 // pred_fallthru
      _
    // Predicated region
    $region10: #{tpu_custom_call.1} parent=1 // pred_check
      _
    $region11: #{tpu_custom_call.1} parent=1 // pred_check_branch
      %15 = sbr.rel (0) target = $region13
    $region12: #{tpu_custom_call.1} parent=1 // pred_region
      %s17 = ssub.s32 2048, 2048
      %18 = vsyncadd [#allocation3], %s17
      %s19 = sshll.u32 [#allocation2], 4
      %s20 = int_to_ptr.vmem [resolvable:$true] %s19
      %25 = dma.hbm_to_vmem [thread:$0]  %s2, 2048, %s20, [#allocation3], 128, 128, 8
    $region13: #{tpu_custom_call.1} parent=1 // pred_fallthru
      _
    // Predicated region
    $region14: #{tpu_custom_call.1} parent=1 // pred_check
      _
    $region15: #{tpu_custom_call.1} parent=1 // pred_check_branch
      %27 = sbr.rel (0) target = $region17
    $region16: #{tpu_custom_call.1} parent=1 // pred_region
      %28 = dma.done [#allocation3], 2048
    $region17: #{tpu_custom_call.1} parent=1 // pred_fallthru
      _
    %v29 = vld [vmem:[%s1] sm:$0xff]
    %v30 = vld [vmem:[#allocation2] sm:$0xff]
    %v31 = vld [vmem:[#allocation2 + $0x8] sm:$0xff]
    %v32 = vld [vmem:[#allocation2 + $0x10] sm:$0xff]
    %v33 = vld [vmem:[#allocation2 + $0x18] sm:$0xff]
    %v34 = vld [vmem:[#allocation2 + $0x20] sm:$0xff]
    %v35 = vld [vmem:[#allocation2 + $0x28] sm:$0xff]
    %v36 = vld [vmem:[#allocation2 + $0x30] sm:$0xff]
    %v37 = vld [vmem:[#allocation2 + $0x38] sm:$0xff]
    %v38 = vld [vmem:[#allocation2 + $0x40] sm:$0xff]
    %v39 = vld [vmem:[#allocation2 + $0x48] sm:$0xff]
    %v40 = vld [vmem:[#allocation2 + $0x50] sm:$0xff]
    %v41 = vld [vmem:[#allocation2 + $0x58] sm:$0xff]
    %v42 = vld [vmem:[#allocation2 + $0x60] sm:$0xff]
    %v43 = vld [vmem:[#allocation2 + $0x68] sm:$0xff]
    %v44 = vld [vmem:[#allocation2 + $0x70] sm:$0xff]
    %v45 = vld [vmem:[#allocation2 + $0x78] sm:$0xff]
    %v46 = vunpack.c.l.bf16 %v30
    %v47 = vunpack.c.h.bf16 %v30
    %v48 = vunpack.c.l.bf16 %v31
    %v49 = vunpack.c.h.bf16 %v31
    %v50 = vunpack.c.l.bf16 %v32
    %v51 = vunpack.c.h.bf16 %v32
    %v52 = vunpack.c.l.bf16 %v33
    %v53 = vunpack.c.h.bf16 %v33
    %v54 = vunpack.c.l.bf16 %v34
    %v55 = vunpack.c.h.bf16 %v34
    %v56 = vunpack.c.l.bf16 %v35
    %v57 = vunpack.c.h.bf16 %v35
    %v58 = vunpack.c.l.bf16 %v36
    %v59 = vunpack.c.h.bf16 %v36
    %v60 = vunpack.c.l.bf16 %v37
    %v61 = vunpack.c.h.bf16 %v37
    %v62 = vunpack.c.l.bf16 %v38
    %v63 = vunpack.c.h.bf16 %v38
    %v64 = vunpack.c.l.bf16 %v39
    %v65 = vunpack.c.h.bf16 %v39
    %v66 = vunpack.c.l.bf16 %v40
    %v67 = vunpack.c.h.bf16 %v40
    %v68 = vunpack.c.l.bf16 %v41
    %v69 = vunpack.c.h.bf16 %v41
    %v70 = vunpack.c.l.bf16 %v42
    %v71 = vunpack.c.h.bf16 %v42
    %v72 = vunpack.c.l.bf16 %v43
    %v73 = vunpack.c.h.bf16 %v43
    %v74 = vunpack.c.l.bf16 %v44
    %v75 = vunpack.c.h.bf16 %v44
    %v76 = vunpack.c.l.bf16 %v45
    %v77 = vunpack.c.h.bf16 %v45
    %78 = vmatprep.subr.mxu0 %v47
    %79 = vmatpush1.msra.mxu0 %v46
    %80 = vmatprep.subr.mxu0 %v49
    %81 = vmatpush1.msra.mxu0 %v48
    %82 = vmatprep.subr.mxu0 %v51
    %83 = vmatpush1.msra.mxu0 %v50
    %84 = vmatprep.subr.mxu0 %v53
    %85 = vmatpush1.msra.mxu0 %v52
    %86 = vmatprep.subr.mxu0 %v55
    %87 = vmatpush1.msra.mxu0 %v54
    %88 = vmatprep.subr.mxu0 %v57
    %89 = vmatpush1.msra.mxu0 %v56
    %90 = vmatprep.subr.mxu0 %v59
    %91 = vmatpush1.msra.mxu0 %v58
    %92 = vmatprep.subr.mxu0 %v61
    %93 = vmatpush1.msra.mxu0 %v60
    %94 = vmatprep.subr.mxu0 %v63
    %95 = vmatpush1.msra.mxu0 %v62
    %96 = vmatprep.subr.mxu0 %v65
    %97 = vmatpush1.msra.mxu0 %v64
    %98 = vmatprep.subr.mxu0 %v67
    %99 = vmatpush1.msra.mxu0 %v66
    %100 = vmatprep.subr.mxu0 %v69
    %101 = vmatpush1.msra.mxu0 %v68
    %102 = vmatprep.subr.mxu0 %v71
    %103 = vmatpush1.msra.mxu0 %v70
    %104 = vmatprep.subr.mxu0 %v73
    %105 = vmatpush1.msra.mxu0 %v72
    %106 = vmatprep.subr.mxu0 %v75
    %107 = vmatpush1.msra.mxu0 %v74
    %108 = vmatprep.subr.mxu0 %v77
    %109 = vmatpush1.msra.mxu0 %v76
    %110 = vmatprep.subr.mxu0 0.0
    %111 = vmatpush1.msra.mxu0 0.0
    %112 = vmatprep.subr.mxu0 0.0
    %113 = vmatpush1.msra.mxu0 0.0
    %114 = vmatprep.subr.mxu0 0.0
    %115 = vmatpush1.msra.mxu0 0.0
    %116 = vmatprep.subr.mxu0 0.0
    %117 = vmatpush1.msra.mxu0 0.0
    %118 = vmatprep.subr.mxu0 0.0
    %119 = vmatpush1.msra.mxu0 0.0
    %120 = vmatprep.subr.mxu0 0.0
    %121 = vmatpush1.msra.mxu0 0.0
    %122 = vmatprep.subr.mxu0 0.0
    %123 = vmatpush1.msra.mxu0 0.0
    %124 = vmatprep.subr.mxu0 0.0
    %125 = vmatpush1.msra.mxu0 0.0
    %126 = vmatprep.subr.mxu0 0.0
    %127 = vmatpush1.msra.mxu0 0.0
    %128 = vmatprep.subr.mxu0 0.0
    %129 = vmatpush1.msra.mxu0 0.0
    %130 = vmatprep.subr.mxu0 0.0
    %131 = vmatpush1.msra.mxu0 0.0
    %132 = vmatprep.subr.mxu0 0.0
    %133 = vmatpush1.msra.mxu0 0.0
    %134 = vmatprep.subr.mxu0 0.0
    %135 = vmatpush1.msra.mxu0 0.0
    %136 = vmatprep.subr.mxu0 0.0
    %137 = vmatpush1.msra.mxu0 0.0
    %138 = vmatprep.subr.mxu0 0.0
    %139 = vmatpush1.msra.mxu0 0.0
    %140 = vmatprep.subr.mxu0 0.0
    %141 = vmatpush1.msra.mxu0 0.0
    %142 = vmatprep.mubr.f32.mxu0 0.0
    %143 = vmatmul.mubr.f32.gmra.mrb[0].mxu0 %v29
    %v144 = vpop.f32.mrb[0].mxu0
    %v145 = vadd.f32 0.0, %v144
    %v146 = vpop.f32.mrb[0].mxu0
    %v147 = vadd.f32 0.0, %v146
    %148 = vdwg.mxu0
    %v149 = vmul.f32 %v46, %v46
    %v150 = vmul.f32 %v47, %v47
    %v151 = vmul.f32 %v48, %v48
    %v152 = vmul.f32 %v49, %v49
    %v153 = vmul.f32 %v50, %v50
    %v154 = vmul.f32 %v51, %v51
    %v155 = vmul.f32 %v52, %v52
    %v156 = vmul.f32 %v53, %v53
    %v157 = vmul.f32 %v54, %v54
    %v158 = vmul.f32 %v55, %v55
    %v159 = vmul.f32 %v56, %v56
    %v160 = vmul.f32 %v57, %v57
    %v161 = vmul.f32 %v58, %v58
    %v162 = vmul.f32 %v59, %v59
    %v163 = vmul.f32 %v60, %v60
    %v164 = vmul.f32 %v61, %v61
    %v165 = vmul.f32 %v62, %v62
    %v166 = vmul.f32 %v63, %v63
    %v167 = vmul.f32 %v64, %v64
    %v168 = vmul.f32 %v65, %v65
    %v169 = vmul.f32 %v66, %v66
    %v170 = vmul.f32 %v67, %v67
    %v171 = vmul.f32 %v68, %v68
    %v172 = vmul.f32 %v69, %v69
    %v173 = vmul.f32 %v70, %v70
    %v174 = vmul.f32 %v71, %v71
    %v175 = vmul.f32 %v72, %v72
    %v176 = vmul.f32 %v73, %v73
    %v177 = vmul.f32 %v74, %v74
    %v178 = vmul.f32 %v75, %v75
    %v179 = vmul.f32 %v76, %v76
    %v180 = vmul.f32 %v77, %v77
    %v181 = vadd.f32 %v149, %v151
    %v182 = vadd.f32 %v181, %v153
    %v183 = vadd.f32 %v182, %v155
    %v184 = vadd.f32 %v183, %v157
    %v185 = vadd.f32 %v184, %v159
    %v186 = vadd.f32 %v185, %v161
    %v187 = vadd.f32 %v186, %v163
    %v188 = vadd.f32 %v187, %v165
    %v189 = vadd.f32 %v188, %v167
    %v190 = vadd.f32 %v189, %v169
    %v191 = vadd.f32 %v190, %v171
    %v192 = vadd.f32 %v191, %v173
    %v193 = vadd.f32 %v192, %v175
    %v194 = vadd.f32 %v193, %v177
    %v195 = vadd.f32 %v194, %v179
    %v196 = vrot.slane %v195, 4
    %v197 = vadd.f32 %v195, %v196
    %v198 = vrot.slane %v197, 2
    %v199 = vadd.f32 %v197, %v198
    %v200 = vrot.slane %v199, 1
    %v201 = vadd.f32 %v199, %v200
    %v202 = vadd.f32 %v150, %v152
    %v203 = vadd.f32 %v202, %v154
    %v204 = vadd.f32 %v203, %v156
    %v205 = vadd.f32 %v204, %v158
    %v206 = vadd.f32 %v205, %v160
    %v207 = vadd.f32 %v206, %v162
    %v208 = vadd.f32 %v207, %v164
    %v209 = vadd.f32 %v208, %v166
    %v210 = vadd.f32 %v209, %v168
    %v211 = vadd.f32 %v210, %v170
    %v212 = vadd.f32 %v211, %v172
    %v213 = vadd.f32 %v212, %v174
    %v214 = vadd.f32 %v213, %v176
    %v215 = vadd.f32 %v214, %v178
    %v216 = vadd.f32 %v215, %v180
    %v217 = vrot.slane %v216, 4
    %v218 = vadd.f32 %v216, %v217
    %v219 = vrot.slane %v218, 2
    %v220 = vadd.f32 %v218, %v219
    %v221 = vrot.slane %v220, 1
    %v222 = vadd.f32 %v220, %v221
    %v223 = vmax.f32 %v201, 1e-24
    %v224 = vmax.f32 %v222, 1e-24
    %v225 = vrsqrt.pop %v223
    %v226 = vrsqrt.pop %v224
    %v227 = vmul.f32 %v145, %v225
    %v228 = vmul.f32 %v147, %v226
    %v229 = vmul.f32 %v227, %v227
    %v230 = vmul.f32 %v228, %v228
    %v231 = vsub.f32 1.0, %v229
    %v232 = vsub.f32 1.0, %v230
    %v233 = vrsqrt.pop %v231
    %v234 = vmul.f32 %v231, %v233
    %vm235 = vcmp.eq.f32.partialorder %v231, inf
    %v236 = vsel %vm235, %v231, %v234
    %vm237 = vcmp.eq.f32.partialorder %v231, 0.0
    %v238 = vand.u32 %v231, 2147483648
    %v239 = vsel %vm237, %v238, %v236
    %v240 = vrsqrt.pop %v232
    %v241 = vmul.f32 %v232, %v240
    %vm242 = vcmp.eq.f32.partialorder %v232, inf
    %v243 = vsel %vm242, %v232, %v241
    %vm244 = vcmp.eq.f32.partialorder %v232, 0.0
    %v245 = vand.u32 %v232, 2147483648
    %v246 = vsel %vm244, %v245, %v243
    %v247 = vmul.f32 %v227, 0.87758255
    %v248 = vmul.f32 %v228, 0.87758255
    %v249 = vmul.f32 %v239, 0.47942555
    %v250 = vmul.f32 %v246, 0.47942555
    %v251 = vsub.f32 %v247, %v249
    %v252 = vsub.f32 %v248, %v250
    %vm253 = vcmp.gt.f32.partialorder %v227, -0.87758255
    %vm254 = vcmp.gt.f32.partialorder %v228, -0.87758255
    %v255 = vsub.f32 %v227, 0.23971277
    %v256 = vsub.f32 %v228, 0.23971277
    %v257 = vsel %vm253, %v251, %v255
    %v258 = vsel %vm254, %v252, %v256
    %s259 = smul.u32 0, 256
    %v260 = vlaneseq
    %v261 = vand.u32 %v260, 127
    %v262 = vadd.s32 %v261, 128
    %v263 = vstv %s259
    %v264 = vadd.s32 %v263, %v261
    %v265 = vadd.s32 %v263, %v262
    %v266 = vld [vmem:[%s0] sm:$0xff]
    %267 = vset.pattern.permute.xlu0 0
    %268 = vperm.xlu0 %267, %v266
    %v269 = vpop.permute.xlu0 %268
    %vm270 = vcmp.eq.s32.totalorder %v264, %v269
    %vm271 = vcmp.eq.s32.totalorder %v265, %v269
    %v272 = vsel %vm270, %v257, %v227
    %v273 = vsel %vm271, %v258, %v228
    %v274 = vmul.f32 %v272, 64.0
    %v275 = vmul.f32 %v273, 64.0
    %276 = vst [vmem:[#allocation5] sm:$0xff] %v274
    %277 = vst [vmem:[#allocation5 + $0x8] sm:$0xff] %v275
    // Predicated region
    $region18: #{tpu_custom_call.1} parent=1 // pred_check
      _
    $region19: #{tpu_custom_call.1} parent=1 // pred_check_branch
      %279 = sbr.rel (0) target = $region21
    $region20: #{tpu_custom_call.1} parent=1 // pred_region
      %s281 = ssub.s32 256, 256
      %282 = vsyncadd [#allocation4], %s281
      %s284 = sshll.u32 [#allocation5], 4
      %s285 = int_to_ptr.vmem [resolvable:$true] %s284
      %287 = dma.vmem_to_hbm [thread:$0]  %s285, 256, %s3, [#allocation4]
    $region21: #{tpu_custom_call.1} parent=1 // pred_fallthru
      _
    // Predicated region
    $region22: #{tpu_custom_call.1} parent=1 // pred_check
      _
    $region23: #{tpu_custom_call.1} parent=1 // pred_check_branch
      %289 = sbr.rel (0) target = $region25
    $region24: #{tpu_custom_call.1} parent=1 // pred_region
      %290 = dma.done [#allocation4], 256
    $region25: #{tpu_custom_call.1} parent=1 // pred_fallthru
      _
    %291 = vsyncpa [#allocation3], 1
    %292 = vsyncpa [#allocation4], 1

</llo_original>
